<compile_context>
chip_gen: v7x
topology: tpu7x:2x2x1
jax: 0.10.0
libtpu: 0.0.40
codegen_flags: <defaults>
</compile_context>

<pallas_src>
import functools

import jax
import jax.numpy as jnp
from jax.experimental import pallas as pl
from jax.experimental.pallas import tpu as pltpu

LANE = 128
SUBLANE = 8


def _round_up(x, m):
    return ((x + m - 1) // m) * m


# --------------------------------------------------------------------------
# Kernel: fused 4-layer MLP for one batch tile.
# --------------------------------------------------------------------------
def actor_kernel(x_ref, w1_ref, b1_ref, w2_ref, b2_ref, w3_ref, b3_ref,
                 wo_ref, bo_ref, out_ref):
    # Weights arrive pre-cast to bf16 (native MXU dtype on v5e/v6e/v7x).
    # Activations are cast to bf16 just before each matmul; accumulation,
    # bias-add, relu and tanh stay in f32.
    x = x_ref[...].astype(jnp.bfloat16)
    h = jnp.dot(x, w1_ref[...], preferred_element_type=jnp.float32) + b1_ref[...]
    h = jnp.maximum(h, 0.0)
    h = jnp.dot(h.astype(jnp.bfloat16), w2_ref[...],
                preferred_element_type=jnp.float32) + b2_ref[...]
    h = jnp.maximum(h, 0.0)
    h = jnp.dot(h.astype(jnp.bfloat16), w3_ref[...],
                preferred_element_type=jnp.float32) + b3_ref[...]
    h = jnp.maximum(h, 0.0)
    o = jnp.dot(h.astype(jnp.bfloat16), wo_ref[...],
                preferred_element_type=jnp.float32) + bo_ref[...]
    out_ref[...] = jnp.tanh(o).astype(out_ref.dtype)


# --------------------------------------------------------------------------
# Batch-tile selection.
# --------------------------------------------------------------------------
def _choose_batch_tile(B, block_batch):
    # Normalize block_batch to a multiple of the sublane count (robustness).
    block_batch = max(_round_up(block_batch, SUBLANE), SUBLANE)
    if B <= 256:
        # Tiny batch: single grid step. On 1-TC v5e/v6e extra steps are pure
        # ~0.35us/step overhead; the v7x 2-TC split is not worth it yet.
        return max(_round_up(B, SUBLANE), SUBLANE)
    # Large batch: at least 2 parallel steps so v7x can use both TensorCores,
    # capped at block_batch rows per step.
    half = _round_up(-(-B // 2), SUBLANE)
    return min(half, block_batch)


# --------------------------------------------------------------------------
# Wrapper.
# --------------------------------------------------------------------------
@functools.partial(jax.jit, static_argnames=("n_actions", "block_batch"))
def actor_forward(x, prepared, *, n_actions, block_batch=2048):
    """x: [B, n_states + n_goals] float32.

    `prepared` is the output of prepare_actor_params: weights stored as
    bf16 [in, out], biases as f32 [1, out], final layer zero-padded to a
    multiple of 128 output lanes.
    """
    B, in_dim = x.shape
    n_out_pad = prepared["wo"].shape[1]
    h1 = prepared["w1"].shape[1]
    h2 = prepared["w2"].shape[1]
    h3 = prepared["w3"].shape[1]

    # Batch tiling: pad ragged tail with zeros (sliced off after the call).
    tb = _choose_batch_tile(B, block_batch)
    b_pad = _round_up(B, tb)
    if b_pad != B:
        x = jnp.pad(x, ((0, b_pad - B), (0, 0)))
    grid = (b_pad // tb,)

    args = (x, prepared["w1"], prepared["b1"], prepared["w2"], prepared["b2"],
            prepared["w3"], prepared["b3"], prepared["wo"], prepared["bo"])

    def const_spec(a):
        # Weights / biases: full-extent block, constant index map -> stays
        # resident in VMEM across all batch tiles (no re-DMA per step).
        zeros = (0,) * a.ndim
        return pl.BlockSpec(a.shape, lambda i: zeros)

    in_specs = [pl.BlockSpec((tb, in_dim), lambda i: (i, 0))]
    in_specs += [const_spec(a) for a in args[1:]]

    # Advisory cost estimate so XLA can schedule/overlap around the call.
    flops = 2 * b_pad * (in_dim * h1 + h1 * h2 + h2 * h3 + h3 * n_out_pad)
    weight_bytes = sum(int(prepared[k].size) * prepared[k].dtype.itemsize
                       for k in ("w1", "b1", "w2", "b2", "w3", "b3", "wo", "bo"))
    bytes_accessed = x.size * x.dtype.itemsize + b_pad * n_out_pad * 4 + weight_bytes
    cost = pl.CostEstimate(flops=flops,
                           transcendentals=b_pad * n_out_pad,
                           bytes_accessed=int(bytes_accessed))

    out = pl.pallas_call(
        actor_kernel,
        out_shape=jax.ShapeDtypeStruct((b_pad, n_out_pad), jnp.float32),
        grid=grid,
        in_specs=in_specs,
        out_specs=pl.BlockSpec((tb, n_out_pad), lambda i: (i, 0)),
        compiler_params=pltpu.CompilerParams(
            dimension_semantics=("parallel",)),   # both TCs on v7x when grid>=2
        cost_estimate=cost,
    )(*args)

    # Drop batch padding and the zero-padded output lanes.
    return out[:B, :n_actions]


# --------------------------------------------------------------------------
# Parameter construction (mirrors PyTorch nn.Linear default init).
# --------------------------------------------------------------------------
def init_linear(key, fan_in, fan_out):
    # W, b ~ U(-1/sqrt(fan_in), 1/sqrt(fan_in)); stored as [in, out].
    kw, kb = jax.random.split(key)
    bound = 1.0 / jnp.sqrt(jnp.float32(fan_in))
    w = jax.random.uniform(kw, (fan_in, fan_out), jnp.float32, -bound, bound)
    b = jax.random.uniform(kb, (1, fan_out), jnp.float32, -bound, bound)
    return w, b


def make_actor_params(key, n_states, n_actions, n_goals,
                      n_hidden1=256, n_hidden2=256, n_hidden3=256):
    in_dim = n_states + n_goals
    k1, k2, k3, k4 = jax.random.split(key, 4)
    w1, b1 = init_linear(k1, in_dim, n_hidden1)
    w2, b2 = init_linear(k2, n_hidden1, n_hidden2)
    w3, b3 = init_linear(k3, n_hidden2, n_hidden3)
    wo, bo = init_linear(k4, n_hidden3, n_actions)
    return {"w1": w1, "b1": b1, "w2": w2, "b2": b2,
            "w3": w3, "b3": b3, "wo": wo, "bo": bo}


def prepare_actor_params(params, n_actions=None):
    """One-time prep: cast weights to bf16, keep biases f32, and zero-pad the
    final layer to a multiple of 128 output lanes (lane-dense stores)."""
    if n_actions is None:
        n_actions = params["wo"].shape[1]
    n_out_pad = _round_up(max(n_actions, 1), LANE)
    pad = n_out_pad - n_actions
    return {
        "w1": params["w1"].astype(jnp.bfloat16),
        "b1": params["b1"].astype(jnp.float32),
        "w2": params["w2"].astype(jnp.bfloat16),
        "b2": params["b2"].astype(jnp.float32),
        "w3": params["w3"].astype(jnp.bfloat16),
        "b3": params["b3"].astype(jnp.float32),
        "wo": jnp.pad(params["wo"], ((0, 0), (0, pad))).astype(jnp.bfloat16),
        "bo": jnp.pad(params["bo"], ((0, 0), (0, pad))).astype(jnp.float32),
    }


def actor_ref(x, p):
    # Pure-JAX f32 reference for correctness check (master f32 params).
    h = jnp.maximum(x @ p["w1"] + p["b1"], 0.0)
    h = jnp.maximum(h @ p["w2"] + p["b2"], 0.0)
    h = jnp.maximum(h @ p["w3"] + p["b3"], 0.0)
    return jnp.tanh(h @ p["wo"] + p["bo"])


if __name__ == "__main__":
    # Module defaults: n_states=(12,), n_goals=4, n_actions=8, hidden 256.
    n_states, n_goals, n_actions = 12, 4, 8

    key = jax.random.PRNGKey(0)
    kx, kp = jax.random.split(key)
    params = make_actor_params(kp, n_states, n_actions, n_goals)
    prepared = prepare_actor_params(params, n_actions)

    # batch=32 exercises the single-tile path; batch=300 exercises the
    # 2-parallel-tile path plus ragged-tail batch padding.
    for batch in (32, 300):
        x = jax.random.normal(jax.random.fold_in(kx, batch),
                              (batch, n_states + n_goals), jnp.float32)
        out = jax.block_until_ready(actor_forward(x, prepared,
                                                  n_actions=n_actions))
        ref = actor_ref(x, params)
        assert out.shape == (batch, n_actions)
        # bf16 MXU operands across 4 layers: loosened (deliberate) tolerance.
        assert jnp.allclose(out, ref, atol=2e-2, rtol=2e-2), float(
            jnp.max(jnp.abs(out - ref)))

    print("KERNEL_OK")
</pallas_src>

<mosaic_0001>
module attributes {stable_mosaic.version = 11 : i64} {
  func.func @actor_kernel(%arg0: i32, %arg1: memref<32x16xf32, #tpu.memory_space<vmem>>, %arg2: memref<16x256xbf16, #tpu.memory_space<vmem>>, %arg3: memref<1x256xf32, #tpu.memory_space<vmem>>, %arg4: memref<256x256xbf16, #tpu.memory_space<vmem>>, %arg5: memref<1x256xf32, #tpu.memory_space<vmem>>, %arg6: memref<256x256xbf16, #tpu.memory_space<vmem>>, %arg7: memref<1x256xf32, #tpu.memory_space<vmem>>, %arg8: memref<256x128xbf16, #tpu.memory_space<vmem>>, %arg9: memref<1x128xf32, #tpu.memory_space<vmem>>, %arg10: memref<32x128xf32, #tpu.memory_space<vmem>>) attributes {dimension_semantics = [#tpu.dimension_semantics<parallel>], iteration_bounds = array<i64: 1>, scalar_prefetch = 0 : i64, scratch_operands = 0 : i64, tpu.core_type = #tpu.core_type<tc>, window_params = [{transform_indices = @transform_0, window_bounds = array<i64: 32, 16>}, {pipeline_mode = #tpu.pipeline_mode<synchronous>, transform_indices = @transform_1, window_bounds = array<i64: 16, 256>}, {pipeline_mode = #tpu.pipeline_mode<synchronous>, transform_indices = @transform_2, window_bounds = array<i64: 1, 256>}, {pipeline_mode = #tpu.pipeline_mode<synchronous>, transform_indices = @transform_3, window_bounds = array<i64: 256, 256>}, {pipeline_mode = #tpu.pipeline_mode<synchronous>, transform_indices = @transform_4, window_bounds = array<i64: 1, 256>}, {pipeline_mode = #tpu.pipeline_mode<synchronous>, transform_indices = @transform_5, window_bounds = array<i64: 256, 256>}, {pipeline_mode = #tpu.pipeline_mode<synchronous>, transform_indices = @transform_6, window_bounds = array<i64: 1, 256>}, {pipeline_mode = #tpu.pipeline_mode<synchronous>, transform_indices = @transform_7, window_bounds = array<i64: 256, 128>}, {pipeline_mode = #tpu.pipeline_mode<synchronous>, transform_indices = @transform_8, window_bounds = array<i64: 1, 128>}, {transform_indices = @transform_9, window_bounds = array<i64: 32, 128>}]} {
    %c0 = arith.constant 0 : index
    %c0_0 = arith.constant 0 : index
    %0 = vector.load %arg1[%c0, %c0_0] : memref<32x16xf32, #tpu.memory_space<vmem>>, vector<32x16xf32>
    %1 = arith.truncf %0 : vector<32x16xf32> to vector<32x16xbf16>
    %c0_1 = arith.constant 0 : index
    %c0_2 = arith.constant 0 : index
    %2 = vector.load %arg2[%c0_1, %c0_2] : memref<16x256xbf16, #tpu.memory_space<vmem>>, vector<16x256xbf16>
    %cst = arith.constant dense<0.000000e+00> : vector<32x256xf32>
    %3 = tpu.matmul %1, %2, %cst {dimension_numbers = #tpu.dot_dimension_numbers<[1], [0], [0], [1], [0, 0, 1, 1], [], []>} : vector<32x16xbf16>, vector<16x256xbf16>, vector<32x256xf32> -> vector<32x256xf32>
    %c0_3 = arith.constant 0 : index
    %c0_4 = arith.constant 0 : index
    %4 = vector.load %arg3[%c0_3, %c0_4] : memref<1x256xf32, #tpu.memory_space<vmem>>, vector<1x256xf32>
    %5 = vector.broadcast %4 : vector<1x256xf32> to vector<32x256xf32>
    %6 = arith.addf %3, %5 : vector<32x256xf32>
    %cst_5 = arith.constant 0.000000e+00 : f32
    %7 = vector.broadcast %cst_5 : f32 to vector<32x256xf32>
    %8 = arith.maximumf %6, %7 : vector<32x256xf32>
    %9 = arith.truncf %8 : vector<32x256xf32> to vector<32x256xbf16>
    %c0_6 = arith.constant 0 : index
    %c0_7 = arith.constant 0 : index
    %10 = vector.load %arg4[%c0_6, %c0_7] : memref<256x256xbf16, #tpu.memory_space<vmem>>, vector<256x256xbf16>
    %cst_8 = arith.constant dense<0.000000e+00> : vector<32x256xf32>
    %11 = tpu.matmul %9, %10, %cst_8 {dimension_numbers = #tpu.dot_dimension_numbers<[1], [0], [0], [1], [0, 0, 1, 1], [], []>} : vector<32x256xbf16>, vector<256x256xbf16>, vector<32x256xf32> -> vector<32x256xf32>
    %c0_9 = arith.constant 0 : index
    %c0_10 = arith.constant 0 : index
    %12 = vector.load %arg5[%c0_9, %c0_10] : memref<1x256xf32, #tpu.memory_space<vmem>>, vector<1x256xf32>
    %13 = vector.broadcast %12 : vector<1x256xf32> to vector<32x256xf32>
    %14 = arith.addf %11, %13 : vector<32x256xf32>
    %cst_11 = arith.constant 0.000000e+00 : f32
    %15 = vector.broadcast %cst_11 : f32 to vector<32x256xf32>
    %16 = arith.maximumf %14, %15 : vector<32x256xf32>
    %17 = arith.truncf %16 : vector<32x256xf32> to vector<32x256xbf16>
    %c0_12 = arith.constant 0 : index
    %c0_13 = arith.constant 0 : index
    %18 = vector.load %arg6[%c0_12, %c0_13] : memref<256x256xbf16, #tpu.memory_space<vmem>>, vector<256x256xbf16>
    %cst_14 = arith.constant dense<0.000000e+00> : vector<32x256xf32>
    %19 = tpu.matmul %17, %18, %cst_14 {dimension_numbers = #tpu.dot_dimension_numbers<[1], [0], [0], [1], [0, 0, 1, 1], [], []>} : vector<32x256xbf16>, vector<256x256xbf16>, vector<32x256xf32> -> vector<32x256xf32>
    %c0_15 = arith.constant 0 : index
    %c0_16 = arith.constant 0 : index
    %20 = vector.load %arg7[%c0_15, %c0_16] : memref<1x256xf32, #tpu.memory_space<vmem>>, vector<1x256xf32>
    %21 = vector.broadcast %20 : vector<1x256xf32> to vector<32x256xf32>
    %22 = arith.addf %19, %21 : vector<32x256xf32>
    %cst_17 = arith.constant 0.000000e+00 : f32
    %23 = vector.broadcast %cst_17 : f32 to vector<32x256xf32>
    %24 = arith.maximumf %22, %23 : vector<32x256xf32>
    %25 = arith.truncf %24 : vector<32x256xf32> to vector<32x256xbf16>
    %c0_18 = arith.constant 0 : index
    %c0_19 = arith.constant 0 : index
    %26 = vector.load %arg8[%c0_18, %c0_19] : memref<256x128xbf16, #tpu.memory_space<vmem>>, vector<256x128xbf16>
    %cst_20 = arith.constant dense<0.000000e+00> : vector<32x128xf32>
    %27 = tpu.matmul %25, %26, %cst_20 {dimension_numbers = #tpu.dot_dimension_numbers<[1], [0], [0], [1], [0, 0, 1, 1], [], []>} : vector<32x256xbf16>, vector<256x128xbf16>, vector<32x128xf32> -> vector<32x128xf32>
    %c0_21 = arith.constant 0 : index
    %c0_22 = arith.constant 0 : index
    %28 = vector.load %arg9[%c0_21, %c0_22] : memref<1x128xf32, #tpu.memory_space<vmem>>, vector<1x128xf32>
    %29 = vector.broadcast %28 : vector<1x128xf32> to vector<32x128xf32>
    %30 = arith.addf %27, %29 : vector<32x128xf32>
    %31 = math.tanh %30 : vector<32x128xf32>
    %c0_23 = arith.constant 0 : index
    %c0_24 = arith.constant 0 : index
    %32 = vector.load %arg10[%c0_23, %c0_24] : memref<32x128xf32, #tpu.memory_space<vmem>>, vector<32x128xf32>
    tpu.vector_store %arg10[%c0_23, %c0_24], %31 {strides = array<i32>} : memref<32x128xf32, #tpu.memory_space<vmem>>, vector<32x128xf32>,
    return
  }
  func.func @transform_0(%arg0: i32) -> (i32, i32) {
    %c0_i32 = arith.constant 0 : i32
    %c0_i32_0 = arith.constant 0 : i32
    return %arg0, %c0_i32 : i32, i32
  }
  func.func @transform_1(%arg0: i32) -> (i32, i32) {
    %c0_i32 = arith.constant 0 : i32
    %c0_i32_0 = arith.constant 0 : i32
    %c0_i32_1 = arith.constant 0 : i32
    return %c0_i32, %c0_i32_0 : i32, i32
  }
  func.func @transform_2(%arg0: i32) -> (i32, i32) {
    %c0_i32 = arith.constant 0 : i32
    %c0_i32_0 = arith.constant 0 : i32
    %c0_i32_1 = arith.constant 0 : i32
    return %c0_i32, %c0_i32_0 : i32, i32
  }
  func.func @transform_3(%arg0: i32) -> (i32, i32) {
    %c0_i32 = arith.constant 0 : i32
    %c0_i32_0 = arith.constant 0 : i32
    %c0_i32_1 = arith.constant 0 : i32
    return %c0_i32, %c0_i32_0 : i32, i32
  }
  func.func @transform_4(%arg0: i32) -> (i32, i32) {
    %c0_i32 = arith.constant 0 : i32
    %c0_i32_0 = arith.constant 0 : i32
    %c0_i32_1 = arith.constant 0 : i32
    return %c0_i32, %c0_i32_0 : i32, i32
  }
  func.func @transform_5(%arg0: i32) -> (i32, i32) {
    %c0_i32 = arith.constant 0 : i32
    %c0_i32_0 = arith.constant 0 : i32
    %c0_i32_1 = arith.constant 0 : i32
    return %c0_i32, %c0_i32_0 : i32, i32
  }
  func.func @transform_6(%arg0: i32) -> (i32, i32) {
    %c0_i32 = arith.constant 0 : i32
    %c0_i32_0 = arith.constant 0 : i32
    %c0_i32_1 = arith.constant 0 : i32
    return %c0_i32, %c0_i32_0 : i32, i32
  }
  func.func @transform_7(%arg0: i32) -> (i32, i32) {
    %c0_i32 = arith.constant 0 : i32
    %c0_i32_0 = arith.constant 0 : i32
    %c0_i32_1 = arith.constant 0 : i32
    return %c0_i32, %c0_i32_0 : i32, i32
  }
  func.func @transform_8(%arg0: i32) -> (i32, i32) {
    %c0_i32 = arith.constant 0 : i32
    %c0_i32_0 = arith.constant 0 : i32
    %c0_i32_1 = arith.constant 0 : i32
    return %c0_i32, %c0_i32_0 : i32, i32
  }
  func.func @transform_9(%arg0: i32) -> (i32, i32) {
    %c0_i32 = arith.constant 0 : i32
    %c0_i32_0 = arith.constant 0 : i32
    return %arg0, %c0_i32 : i32, i32
  }
}

</mosaic_0001>

<llo_original>
// kernel: actor_forward.1
$region0: #{actor_forward.1}
  #allocation0 [shape = 'u32[]', space=smem, size = 0x4, offset = 0x4, fixed_abs, tag = 'smem constant byte address 0x4 - core index']
  #allocation1 [shape = 'u32[144,128]{1,0:T(1,128)}', space=vmem, size = 0x12000, scoped, tag = 'internal scratch']
  %s0 = inlined_call_operand.vmem [shape: f32[32,16], index: 0, kind: input, shape index: {}]
  %s1 = inlined_call_operand.vmem [shape: bf16[16,256], index: 1, kind: input, shape index: {}]
  %s2 = inlined_call_operand.vmem [shape: f32[1,256], index: 2, kind: input, shape index: {}]
  %s3 = inlined_call_operand.hbm [shape: bf16[256,256], index: 3, kind: input, shape index: {}]
  %s4 = inlined_call_operand.vmem [shape: f32[1,256], index: 4, kind: input, shape index: {}]
  %s5 = inlined_call_operand.hbm [shape: bf16[256,256], index: 5, kind: input, shape index: {}]
  %s6 = inlined_call_operand.vmem [shape: f32[1,256], index: 6, kind: input, shape index: {}]
  %s7 = inlined_call_operand.hbm [shape: bf16[256,128], index: 7, kind: input, shape index: {}]
  %s8 = inlined_call_operand.vmem [shape: f32[1,128], index: 8, kind: input, shape index: {}]
  %s9 = inlined_call_operand.vmem [shape: f32[32,128], index: 9, kind: output, shape index: {}]
  %s10 = sld [smem:[#allocation0]]
  $region58: #{actor_forward.1} parent=0
    _
  %s12 = ssub.s32 1, %s10
  %s13 = scalar_select 0, %s12, %s10
  $region1: #{actor_forward.1} parent=0
    #allocation2 [shape = 'u8[131072]{0}', space=vmem, size = 0x20000, scoped, tag = 'input window, operand 3, single buffered']
    #allocation3 [shape = 's32[1]{0}', space=sflag, size = 0x4, scoped, tag = 'scoped memory for actor_forward.1']
    #allocation4 [shape = 'u8[131072]{0}', space=vmem, size = 0x20000, scoped, tag = 'input window, operand 5, single buffered']
    #allocation5 [shape = 's32[1]{0}', space=sflag, size = 0x4, scoped, tag = 'scoped memory for actor_forward.1']
    #allocation6 [shape = 'u8[65536]{0}', space=vmem, size = 0x10000, scoped, tag = 'input window, operand 7, single buffered']
    %14 = vsyncpa [#allocation3], 0
    %15 = vsyncpa [#allocation5], 0
    // Predicated region
    $region2: #{actor_forward.1} parent=1 // pred_check
      _
    $region3: #{actor_forward.1} parent=1 // pred_check_branch
      %17 = sbr.rel (0) target = $region5
    $region4: #{actor_forward.1} parent=1 // pred_region
      _
    $region5: #{actor_forward.1} parent=1 // pred_fallthru
      _
    // Predicated region
    $region6: #{actor_forward.1} parent=1 // pred_check
      _
    $region7: #{actor_forward.1} parent=1 // pred_check_branch
      %19 = sbr.rel (0) target = $region9
    $region8: #{actor_forward.1} parent=1 // pred_region
      _
    $region9: #{actor_forward.1} parent=1 // pred_fallthru
      _
    // Predicated region
    $region10: #{actor_forward.1} parent=1 // pred_check
      _
    $region11: #{actor_forward.1} parent=1 // pred_check_branch
      %21 = sbr.rel (0) target = $region13
    $region12: #{actor_forward.1} parent=1 // pred_region
      _
    $region13: #{actor_forward.1} parent=1 // pred_fallthru
      _
    // Predicated region
    $region14: #{actor_forward.1} parent=1 // pred_check
      _
    $region15: #{actor_forward.1} parent=1 // pred_check_branch
      %23 = sbr.rel (0) target = $region17
    $region16: #{actor_forward.1} parent=1 // pred_region
      %s25 = ssub.s32 4096, 4096
      %26 = vsyncadd [#allocation3], %s25
      %s27 = sshll.u32 [#allocation2], 4
      %s28 = int_to_ptr.vmem [resolvable:$true] %s27
      %33 = dma.hbm_to_vmem [thread:$0]  %s3, 4096, %s28, [#allocation3], 128, 128, 8
    $region17: #{actor_forward.1} parent=1 // pred_fallthru
      _
    // Predicated region
    $region18: #{actor_forward.1} parent=1 // pred_check
      _
    $region19: #{actor_forward.1} parent=1 // pred_check_branch
      %35 = sbr.rel (0) target = $region21
    $region20: #{actor_forward.1} parent=1 // pred_region
      _
    $region21: #{actor_forward.1} parent=1 // pred_fallthru
      _
    // Predicated region
    $region22: #{actor_forward.1} parent=1 // pred_check
      _
    $region23: #{actor_forward.1} parent=1 // pred_check_branch
      %37 = sbr.rel (0) target = $region25
    $region24: #{actor_forward.1} parent=1 // pred_region
      %s39 = ssub.s32 4096, 4096
      %40 = vsyncadd [#allocation5], %s39
      %s41 = sshll.u32 [#allocation4], 4
      %s42 = int_to_ptr.vmem [resolvable:$true] %s41
      %47 = dma.hbm_to_vmem [thread:$0]  %s5, 4096, %s42, [#allocation5], 128, 128, 8
    $region25: #{actor_forward.1} parent=1 // pred_fallthru
      _
    // Predicated region
    $region26: #{actor_forward.1} parent=1 // pred_check
      _
    $region27: #{actor_forward.1} parent=1 // pred_check_branch
      %49 = sbr.rel (0) target = $region29
    $region28: #{actor_forward.1} parent=1 // pred_region
      _
    $region29: #{actor_forward.1} parent=1 // pred_fallthru
      _
    // Predicated region
    $region30: #{actor_forward.1} parent=1 // pred_check
      _
    $region31: #{actor_forward.1} parent=1 // pred_check_branch
      %51 = sbr.rel (0) target = $region33
    $region32: #{actor_forward.1} parent=1 // pred_region
      %s53 = ssub.s32 2048, 2048
      %54 = vsyncadd [#allocation5], %s53
      %s55 = sshll.u32 [#allocation6], 4
      %s56 = int_to_ptr.vmem [resolvable:$true] %s55
      %61 = dma.hbm_to_vmem [thread:$0]  %s7, 2048, %s56, [#allocation5], 64, 64, 4
    $region33: #{actor_forward.1} parent=1 // pred_fallthru
      _
    // Predicated region
    $region34: #{actor_forward.1} parent=1 // pred_check
      _
    $region35: #{actor_forward.1} parent=1 // pred_check_branch
      %63 = sbr.rel (0) target = $region37
    $region36: #{actor_forward.1} parent=1 // pred_region
      _
    $region37: #{actor_forward.1} parent=1 // pred_fallthru
      _
    // Predicated region
    $region38: #{actor_forward.1} parent=1 // pred_check
      _
    $region39: #{actor_forward.1} parent=1 // pred_check_branch
      %65 = sbr.rel (0) target = $region41
    $region40: #{actor_forward.1} parent=1 // pred_region
      %66 = dma.done [#allocation3], 4096
    $region41: #{actor_forward.1} parent=1 // pred_fallthru
      _
    // Predicated region
    $region42: #{actor_forward.1} parent=1 // pred_check
      _
    $region43: #{actor_forward.1} parent=1 // pred_check_branch
      %68 = sbr.rel (0) target = $region45
    $region44: #{actor_forward.1} parent=1 // pred_region
      %69 = dma.done [#allocation5], 4096
    $region45: #{actor_forward.1} parent=1 // pred_fallthru
      _
    // Predicated region
    $region46: #{actor_forward.1} parent=1 // pred_check
      _
    $region47: #{actor_forward.1} parent=1 // pred_check_branch
      %71 = sbr.rel (0) target = $region49
    $region48: #{actor_forward.1} parent=1 // pred_region
      %72 = dma.done [#allocation5], 2048
    $region49: #{actor_forward.1} parent=1 // pred_fallthru
      _
    %v74 = vld [vmem:[%s0] sm:$0xff]
    %v75 = vld [vmem:[%s0 + $0x8] sm:$0xff]
    %v76 = vld [vmem:[%s0 + $0x10] sm:$0xff]
    %v77 = vld [vmem:[%s0 + $0x18] sm:$0xff]
    %v78 = vpack.c.bf16 %v75, %v74
    %v79 = vpack.c.bf16 %v77, %v76
    %v80 = vld [vmem:[%s1] sm:$0xff]
    %v81 = vld [vmem:[%s1 + $0x8] sm:$0xff]
    %v82 = vld [vmem:[%s2] sm:$0x3]
    %v84 = vlaneseq
    %v85 = vshrl.u32 %v84, 7
    %v86 = vsub.s32 0, %v85
    %v87 = vrot.slane %v82, %v86
    %v88 = vlaneseq
    %v89 = vshrl.u32 %v88, 7
    %v90 = vsub.s32 1, %v89
    %v91 = vrot.slane %v82, %v90
    %v96 = vunpack.c.l.b16 %v80
    %v97 = vunpack.c.h.b16 %v80
    %v98 = vunpack.c.l.b16 %v81
    %v99 = vunpack.c.h.b16 %v81
    %v100 = vpack.c.b16 %v98, %v96
    %v101 = vpack.c.b16 %v99, %v97
    %vm104 = vcmask 130048
    %v106 = vsel %vm104, %v78, 0
    %v109 = vsel %vm104, %v79, 0
    %111 = vmatprep.subr.bf16.mxu0 %v101
    %112 = vmatpush1.bf16.msra.mxu0 %v100
    %113 = vmatprep.subr.bf16.mxu0 0
    %114 = vmatpush1.bf16.msra.mxu0 0
    %115 = vmatprep.subr.bf16.mxu0 0
    %116 = vmatpush1.bf16.msra.mxu0 0
    %117 = vmatprep.subr.bf16.mxu0 0
    %118 = vmatpush1.bf16.msra.mxu0 0
    %119 = vmatprep.subr.bf16.mxu0 0
    %120 = vmatpush1.bf16.msra.mxu0 0
    %121 = vmatprep.subr.bf16.mxu0 0
    %122 = vmatpush1.bf16.msra.mxu0 0
    %123 = vmatprep.subr.bf16.mxu0 0
    %124 = vmatpush1.bf16.msra.mxu0 0
    %125 = vmatprep.subr.bf16.mxu0 0
    %126 = vmatpush1.bf16.msra.mxu0 0
    %127 = vmatprep.subr.bf16.mxu0 0
    %128 = vmatpush1.bf16.msra.mxu0 0
    %129 = vmatprep.subr.bf16.mxu0 0
    %130 = vmatpush1.bf16.msra.mxu0 0
    %131 = vmatprep.subr.bf16.mxu0 0
    %132 = vmatpush1.bf16.msra.mxu0 0
    %133 = vmatprep.subr.bf16.mxu0 0
    %134 = vmatpush1.bf16.msra.mxu0 0
    %135 = vmatprep.subr.bf16.mxu0 0
    %136 = vmatpush1.bf16.msra.mxu0 0
    %137 = vmatprep.subr.bf16.mxu0 0
    %138 = vmatpush1.bf16.msra.mxu0 0
    %139 = vmatprep.subr.bf16.mxu0 0
    %140 = vmatpush1.bf16.msra.mxu0 0
    %141 = vmatprep.subr.bf16.mxu0 0
    %142 = vmatpush1.bf16.msra.mxu0 0
    %143 = vmatprep.mubr.bf16.mxu0 0
    %144 = vmatmul.mubr.bf16.gmra.mrb[0].mxu0 %v106
    %v145 = vpop.f32.mrb[0].mxu0
    %v146 = vadd.f32 %v87, %v145
    %v147 = vpop.f32.mrb[0].mxu0
    %v148 = vadd.f32 %v91, %v147
    %v149 = vpop.f32.mrb[0].mxu0
    %v150 = vadd.f32 %v87, %v149
    %v151 = vpop.f32.mrb[0].mxu0
    %v152 = vadd.f32 %v91, %v151
    %153 = vmatprep.mubr.bf16.mxu0 0
    %154 = vmatmul.mubr.bf16.gmra.mrb[0].mxu0 %v109
    %v155 = vpop.f32.mrb[0].mxu0
    %v156 = vadd.f32 %v87, %v155
    %v157 = vpop.f32.mrb[0].mxu0
    %v158 = vadd.f32 %v91, %v157
    %v159 = vpop.f32.mrb[0].mxu0
    %v160 = vadd.f32 %v87, %v159
    %v161 = vpop.f32.mrb[0].mxu0
    %v162 = vadd.f32 %v91, %v161
    %163 = vdwg.mxu0
    %v164 = vmax.f32 %v146, 0.0
    %v165 = vmax.f32 %v148, 0.0
    %v166 = vmax.f32 %v150, 0.0
    %v167 = vmax.f32 %v152, 0.0
    %v168 = vmax.f32 %v156, 0.0
    %v169 = vmax.f32 %v158, 0.0
    %v170 = vmax.f32 %v160, 0.0
    %v171 = vmax.f32 %v162, 0.0
    %v172 = vpack.c.bf16 %v166, %v164
    %v173 = vpack.c.bf16 %v167, %v165
    %v174 = vpack.c.bf16 %v170, %v168
    %v175 = vpack.c.bf16 %v171, %v169
    %v176 = vld [vmem:[#allocation2] sm:$0xff]
    %v177 = vld [vmem:[#allocation2 + $0x8] sm:$0xff]
    %v178 = vld [vmem:[#allocation2 + $0x10] sm:$0xff]
    %v179 = vld [vmem:[#allocation2 + $0x18] sm:$0xff]
    %v180 = vld [vmem:[#allocation2 + $0x20] sm:$0xff]
    %v181 = vld [vmem:[#allocation2 + $0x28] sm:$0xff]
    %v182 = vld [vmem:[#allocation2 + $0x30] sm:$0xff]
    %v183 = vld [vmem:[#allocation2 + $0x38] sm:$0xff]
    %v184 = vld [vmem:[#allocation2 + $0x40] sm:$0xff]
    %v185 = vld [vmem:[#allocation2 + $0x48] sm:$0xff]
    %v186 = vld [vmem:[#allocation2 + $0x50] sm:$0xff]
    %v187 = vld [vmem:[#allocation2 + $0x58] sm:$0xff]
    %v188 = vld [vmem:[#allocation2 + $0x60] sm:$0xff]
    %v189 = vld [vmem:[#allocation2 + $0x68] sm:$0xff]
    %v190 = vld [vmem:[#allocation2 + $0x70] sm:$0xff]
    %v191 = vld [vmem:[#allocation2 + $0x78] sm:$0xff]
    %v192 = vld [vmem:[#allocation2 + $0x80] sm:$0xff]
    %v193 = vld [vmem:[#allocation2 + $0x88] sm:$0xff]
    %v194 = vld [vmem:[#allocation2 + $0x90] sm:$0xff]
    %v195 = vld [vmem:[#allocation2 + $0x98] sm:$0xff]
    %v196 = vld [vmem:[#allocation2 + $0xa0] sm:$0xff]
    %v197 = vld [vmem:[#allocation2 + $0xa8] sm:$0xff]
    %v198 = vld [vmem:[#allocation2 + $0xb0] sm:$0xff]
    %v199 = vld [vmem:[#allocation2 + $0xb8] sm:$0xff]
    %v200 = vld [vmem:[#allocation2 + $0xc0] sm:$0xff]
    %v201 = vld [vmem:[#allocation2 + $0xc8] sm:$0xff]
    %v202 = vld [vmem:[#allocation2 + $0xd0] sm:$0xff]
    %v203 = vld [vmem:[#allocation2 + $0xd8] sm:$0xff]
    %v204 = vld [vmem:[#allocation2 + $0xe0] sm:$0xff]
    %v205 = vld [vmem:[#allocation2 + $0xe8] sm:$0xff]
    %v206 = vld [vmem:[#allocation2 + $0xf0] sm:$0xff]
    %v207 = vld [vmem:[#allocation2 + $0xf8] sm:$0xff]
    %v208 = vld [vmem:[%s4] sm:$0x3]
    %v210 = vlaneseq
    %v211 = vshrl.u32 %v210, 7
    %v212 = vsub.s32 0, %v211
    %v213 = vrot.slane %v208, %v212
    %v214 = vlaneseq
    %v215 = vshrl.u32 %v214, 7
    %v216 = vsub.s32 1, %v215
    %v217 = vrot.slane %v208, %v216
    %v252 = vunpack.c.l.b16 %v176
    %v253 = vunpack.c.h.b16 %v176
    %v254 = vunpack.c.l.b16 %v177
    %v255 = vunpack.c.h.b16 %v177
    %v256 = vunpack.c.l.b16 %v178
    %v257 = vunpack.c.h.b16 %v178
    %v258 = vunpack.c.l.b16 %v179
    %v259 = vunpack.c.h.b16 %v179
    %v260 = vunpack.c.l.b16 %v180
    %v261 = vunpack.c.h.b16 %v180
    %v262 = vunpack.c.l.b16 %v181
    %v263 = vunpack.c.h.b16 %v181
    %v264 = vunpack.c.l.b16 %v182
    %v265 = vunpack.c.h.b16 %v182
    %v266 = vunpack.c.l.b16 %v183
    %v267 = vunpack.c.h.b16 %v183
    %v268 = vunpack.c.l.b16 %v184
    %v269 = vunpack.c.h.b16 %v184
    %v270 = vunpack.c.l.b16 %v185
    %v271 = vunpack.c.h.b16 %v185
    %v272 = vunpack.c.l.b16 %v186
    %v273 = vunpack.c.h.b16 %v186
    %v274 = vunpack.c.l.b16 %v187
    %v275 = vunpack.c.h.b16 %v187
    %v276 = vunpack.c.l.b16 %v188
    %v277 = vunpack.c.h.b16 %v188
    %v278 = vunpack.c.l.b16 %v189
    %v279 = vunpack.c.h.b16 %v189
    %v280 = vunpack.c.l.b16 %v190
    %v281 = vunpack.c.h.b16 %v190
    %v282 = vunpack.c.l.b16 %v191
    %v283 = vunpack.c.h.b16 %v191
    %v284 = vunpack.c.l.b16 %v192
    %v285 = vunpack.c.h.b16 %v192
    %v286 = vunpack.c.l.b16 %v193
    %v287 = vunpack.c.h.b16 %v193
    %v288 = vunpack.c.l.b16 %v194
    %v289 = vunpack.c.h.b16 %v194
    %v290 = vunpack.c.l.b16 %v195
    %v291 = vunpack.c.h.b16 %v195
    %v292 = vunpack.c.l.b16 %v196
    %v293 = vunpack.c.h.b16 %v196
    %v294 = vunpack.c.l.b16 %v197
    %v295 = vunpack.c.h.b16 %v197
    %v296 = vunpack.c.l.b16 %v198
    %v297 = vunpack.c.h.b16 %v198
    %v298 = vunpack.c.l.b16 %v199
    %v299 = vunpack.c.h.b16 %v199
    %v300 = vunpack.c.l.b16 %v200
    %v301 = vunpack.c.h.b16 %v200
    %v302 = vunpack.c.l.b16 %v201
    %v303 = vunpack.c.h.b16 %v201
    %v304 = vunpack.c.l.b16 %v202
    %v305 = vunpack.c.h.b16 %v202
    %v306 = vunpack.c.l.b16 %v203
    %v307 = vunpack.c.h.b16 %v203
    %v308 = vunpack.c.l.b16 %v204
    %v309 = vunpack.c.h.b16 %v204
    %v310 = vunpack.c.l.b16 %v205
    %v311 = vunpack.c.h.b16 %v205
    %v312 = vunpack.c.l.b16 %v206
    %v313 = vunpack.c.h.b16 %v206
    %v314 = vunpack.c.l.b16 %v207
    %v315 = vunpack.c.h.b16 %v207
    %v316 = vpack.c.b16 %v254, %v252
    %v317 = vpack.c.b16 %v255, %v253
    %v318 = vpack.c.b16 %v258, %v256
    %v319 = vpack.c.b16 %v259, %v257
    %v320 = vpack.c.b16 %v262, %v260
    %v321 = vpack.c.b16 %v263, %v261
    %v322 = vpack.c.b16 %v266, %v264
    %v323 = vpack.c.b16 %v267, %v265
    %v324 = vpack.c.b16 %v270, %v268
    %v325 = vpack.c.b16 %v271, %v269
    %v326 = vpack.c.b16 %v274, %v272
    %v327 = vpack.c.b16 %v275, %v273
    %v328 = vpack.c.b16 %v278, %v276
    %v329 = vpack.c.b16 %v279, %v277
    %v330 = vpack.c.b16 %v282, %v280
    %v331 = vpack.c.b16 %v283, %v281
    %v332 = vpack.c.b16 %v286, %v284
    %v333 = vpack.c.b16 %v287, %v285
    %v334 = vpack.c.b16 %v290, %v288
    %v335 = vpack.c.b16 %v291, %v289
    %v336 = vpack.c.b16 %v294, %v292
    %v337 = vpack.c.b16 %v295, %v293
    %v338 = vpack.c.b16 %v298, %v296
    %v339 = vpack.c.b16 %v299, %v297
    %v340 = vpack.c.b16 %v302, %v300
    %v341 = vpack.c.b16 %v303, %v301
    %v342 = vpack.c.b16 %v306, %v304
    %v343 = vpack.c.b16 %v307, %v305
    %v344 = vpack.c.b16 %v310, %v308
    %v345 = vpack.c.b16 %v311, %v309
    %v346 = vpack.c.b16 %v314, %v312
    %v347 = vpack.c.b16 %v315, %v313
    %380 = vmatprep.subr.bf16.mxu0 %v317
    %381 = vmatpush1.bf16.msra.mxu0 %v316
    %382 = vmatprep.subr.bf16.mxu0 %v319
    %383 = vmatpush1.bf16.msra.mxu0 %v318
    %384 = vmatprep.subr.bf16.mxu0 %v321
    %385 = vmatpush1.bf16.msra.mxu0 %v320
    %386 = vmatprep.subr.bf16.mxu0 %v323
    %387 = vmatpush1.bf16.msra.mxu0 %v322
    %388 = vmatprep.subr.bf16.mxu0 %v325
    %389 = vmatpush1.bf16.msra.mxu0 %v324
    %390 = vmatprep.subr.bf16.mxu0 %v327
    %391 = vmatpush1.bf16.msra.mxu0 %v326
    %392 = vmatprep.subr.bf16.mxu0 %v329
    %393 = vmatpush1.bf16.msra.mxu0 %v328
    %394 = vmatprep.subr.bf16.mxu0 %v331
    %395 = vmatpush1.bf16.msra.mxu0 %v330
    %396 = vmatprep.subr.bf16.mxu0 %v333
    %397 = vmatpush1.bf16.msra.mxu0 %v332
    %398 = vmatprep.subr.bf16.mxu0 %v335
    %399 = vmatpush1.bf16.msra.mxu0 %v334
    %400 = vmatprep.subr.bf16.mxu0 %v337
    %401 = vmatpush1.bf16.msra.mxu0 %v336
    %402 = vmatprep.subr.bf16.mxu0 %v339
    %403 = vmatpush1.bf16.msra.mxu0 %v338
    %404 = vmatprep.subr.bf16.mxu0 %v341
    %405 = vmatpush1.bf16.msra.mxu0 %v340
    %406 = vmatprep.subr.bf16.mxu0 %v343
    %407 = vmatpush1.bf16.msra.mxu0 %v342
    %408 = vmatprep.subr.bf16.mxu0 %v345
    %409 = vmatpush1.bf16.msra.mxu0 %v344
    %410 = vmatprep.subr.bf16.mxu0 %v347
    %411 = vmatpush1.bf16.msra.mxu0 %v346
    %412 = vmatprep.mubr.bf16.mxu0 %v173
    %413 = vmatmul.mubr.bf16.gmra.mrb[0].mxu0 %v172
    %v414 = vpop.f32.mrb[0].mxu0
    %v415 = vadd.f32 %v213, %v414
    %v416 = vpop.f32.mrb[0].mxu0
    %v417 = vadd.f32 %v217, %v416
    %v418 = vpop.f32.mrb[0].mxu0
    %v419 = vadd.f32 %v213, %v418
    %v420 = vpop.f32.mrb[0].mxu0
    %v421 = vadd.f32 %v217, %v420
    %422 = vmatprep.mubr.bf16.mxu0 %v175
    %423 = vmatmul.mubr.bf16.gmra.mrb[0].mxu0 %v174
    %v424 = vpop.f32.mrb[0].mxu0
    %v425 = vadd.f32 %v213, %v424
    %v426 = vpop.f32.mrb[0].mxu0
    %v427 = vadd.f32 %v217, %v426
    %v428 = vpop.f32.mrb[0].mxu0
    %v429 = vadd.f32 %v213, %v428
    %v430 = vpop.f32.mrb[0].mxu0
    %v431 = vadd.f32 %v217, %v430
    %432 = vdwg.mxu0
    %v433 = vmax.f32 %v415, 0.0
    %v434 = vmax.f32 %v417, 0.0
    %v435 = vmax.f32 %v419, 0.0
    %v436 = vmax.f32 %v421, 0.0
    %v437 = vmax.f32 %v425, 0.0
    %v438 = vmax.f32 %v427, 0.0
    %v439 = vmax.f32 %v429, 0.0
    %v440 = vmax.f32 %v431, 0.0
    %v441 = vpack.c.bf16 %v435, %v433
    %v442 = vpack.c.bf16 %v436, %v434
    %v443 = vpack.c.bf16 %v439, %v437
    %v444 = vpack.c.bf16 %v440, %v438
    %v445 = vld [vmem:[#allocation4] sm:$0xff]
    %v446 = vld [vmem:[#allocation4 + $0x8] sm:$0xff]
    %v447 = vld [vmem:[#allocation4 + $0x10] sm:$0xff]
    %v448 = vld [vmem:[#allocation4 + $0x18] sm:$0xff]
    %v449 = vld [vmem:[#allocation4 + $0x20] sm:$0xff]
    %v450 = vld [vmem:[#allocation4 + $0x28] sm:$0xff]
    %v451 = vld [vmem:[#allocation4 + $0x30] sm:$0xff]
    %v452 = vld [vmem:[#allocation4 + $0x38] sm:$0xff]
    %v453 = vld [vmem:[#allocation4 + $0x40] sm:$0xff]
    %v454 = vld [vmem:[#allocation4 + $0x48] sm:$0xff]
    %v455 = vld [vmem:[#allocation4 + $0x50] sm:$0xff]
    %v456 = vld [vmem:[#allocation4 + $0x58] sm:$0xff]
    %v457 = vld [vmem:[#allocation4 + $0x60] sm:$0xff]
    %v458 = vld [vmem:[#allocation4 + $0x68] sm:$0xff]
    %v459 = vld [vmem:[#allocation4 + $0x70] sm:$0xff]
    %v460 = vld [vmem:[#allocation4 + $0x78] sm:$0xff]
    %v461 = vld [vmem:[#allocation4 + $0x80] sm:$0xff]
    %v462 = vld [vmem:[#allocation4 + $0x88] sm:$0xff]
    %v463 = vld [vmem:[#allocation4 + $0x90] sm:$0xff]
    %v464 = vld [vmem:[#allocation4 + $0x98] sm:$0xff]
    %v465 = vld [vmem:[#allocation4 + $0xa0] sm:$0xff]
    %v466 = vld [vmem:[#allocation4 + $0xa8] sm:$0xff]
    %v467 = vld [vmem:[#allocation4 + $0xb0] sm:$0xff]
    %v468 = vld [vmem:[#allocation4 + $0xb8] sm:$0xff]
    %v469 = vld [vmem:[#allocation4 + $0xc0] sm:$0xff]
    %v470 = vld [vmem:[#allocation4 + $0xc8] sm:$0xff]
    %v471 = vld [vmem:[#allocation4 + $0xd0] sm:$0xff]
    %v472 = vld [vmem:[#allocation4 + $0xd8] sm:$0xff]
    %v473 = vld [vmem:[#allocation4 + $0xe0] sm:$0xff]
    %v474 = vld [vmem:[#allocation4 + $0xe8] sm:$0xff]
    %v475 = vld [vmem:[#allocation4 + $0xf0] sm:$0xff]
    %v476 = vld [vmem:[#allocation4 + $0xf8] sm:$0xff]
    %v477 = vld [vmem:[%s6] sm:$0x3]
    %v479 = vlaneseq
    %v480 = vshrl.u32 %v479, 7
    %v481 = vsub.s32 0, %v480
    %v482 = vrot.slane %v477, %v481
    %v483 = vlaneseq
    %v484 = vshrl.u32 %v483, 7
    %v485 = vsub.s32 1, %v484
    %v486 = vrot.slane %v477, %v485
    %v521 = vunpack.c.l.b16 %v445
    %v522 = vunpack.c.h.b16 %v445
    %v523 = vunpack.c.l.b16 %v446
    %v524 = vunpack.c.h.b16 %v446
    %v525 = vunpack.c.l.b16 %v447
    %v526 = vunpack.c.h.b16 %v447
    %v527 = vunpack.c.l.b16 %v448
    %v528 = vunpack.c.h.b16 %v448
    %v529 = vunpack.c.l.b16 %v449
    %v530 = vunpack.c.h.b16 %v449
    %v531 = vunpack.c.l.b16 %v450
    %v532 = vunpack.c.h.b16 %v450
    %v533 = vunpack.c.l.b16 %v451
    %v534 = vunpack.c.h.b16 %v451
    %v535 = vunpack.c.l.b16 %v452
    %v536 = vunpack.c.h.b16 %v452
    %v537 = vunpack.c.l.b16 %v453
    %v538 = vunpack.c.h.b16 %v453
    %v539 = vunpack.c.l.b16 %v454
    %v540 = vunpack.c.h.b16 %v454
    %v541 = vunpack.c.l.b16 %v455
    %v542 = vunpack.c.h.b16 %v455
    %v543 = vunpack.c.l.b16 %v456
    %v544 = vunpack.c.h.b16 %v456
    %v545 = vunpack.c.l.b16 %v457
    %v546 = vunpack.c.h.b16 %v457
    %v547 = vunpack.c.l.b16 %v458
    %v548 = vunpack.c.h.b16 %v458
    %v549 = vunpack.c.l.b16 %v459
    %v550 = vunpack.c.h.b16 %v459
    %v551 = vunpack.c.l.b16 %v460
    %v552 = vunpack.c.h.b16 %v460
    %v553 = vunpack.c.l.b16 %v461
    %v554 = vunpack.c.h.b16 %v461
    %v555 = vunpack.c.l.b16 %v462
    %v556 = vunpack.c.h.b16 %v462
    %v557 = vunpack.c.l.b16 %v463
    %v558 = vunpack.c.h.b16 %v463
    %v559 = vunpack.c.l.b16 %v464
    %v560 = vunpack.c.h.b16 %v464
    %v561 = vunpack.c.l.b16 %v465
    %v562 = vunpack.c.h.b16 %v465
    %v563 = vunpack.c.l.b16 %v466
    %v564 = vunpack.c.h.b16 %v466
    %v565 = vunpack.c.l.b16 %v467
    %v566 = vunpack.c.h.b16 %v467
    %v567 = vunpack.c.l.b16 %v468
    %v568 = vunpack.c.h.b16 %v468
    %v569 = vunpack.c.l.b16 %v469
    %v570 = vunpack.c.h.b16 %v469
    %v571 = vunpack.c.l.b16 %v470
    %v572 = vunpack.c.h.b16 %v470
    %v573 = vunpack.c.l.b16 %v471
    %v574 = vunpack.c.h.b16 %v471
    %v575 = vunpack.c.l.b16 %v472
    %v576 = vunpack.c.h.b16 %v472
    %v577 = vunpack.c.l.b16 %v473
    %v578 = vunpack.c.h.b16 %v473
    %v579 = vunpack.c.l.b16 %v474
    %v580 = vunpack.c.h.b16 %v474
    %v581 = vunpack.c.l.b16 %v475
    %v582 = vunpack.c.h.b16 %v475
    %v583 = vunpack.c.l.b16 %v476
    %v584 = vunpack.c.h.b16 %v476
    %v585 = vpack.c.b16 %v523, %v521
    %v586 = vpack.c.b16 %v524, %v522
    %v587 = vpack.c.b16 %v527, %v525
    %v588 = vpack.c.b16 %v528, %v526
    %v589 = vpack.c.b16 %v531, %v529
    %v590 = vpack.c.b16 %v532, %v530
    %v591 = vpack.c.b16 %v535, %v533
    %v592 = vpack.c.b16 %v536, %v534
    %v593 = vpack.c.b16 %v539, %v537
    %v594 = vpack.c.b16 %v540, %v538
    %v595 = vpack.c.b16 %v543, %v541
    %v596 = vpack.c.b16 %v544, %v542
    %v597 = vpack.c.b16 %v547, %v545
    %v598 = vpack.c.b16 %v548, %v546
    %v599 = vpack.c.b16 %v551, %v549
    %v600 = vpack.c.b16 %v552, %v550
    %v601 = vpack.c.b16 %v555, %v553
    %v602 = vpack.c.b16 %v556, %v554
    %v603 = vpack.c.b16 %v559, %v557
    %v604 = vpack.c.b16 %v560, %v558
    %v605 = vpack.c.b16 %v563, %v561
    %v606 = vpack.c.b16 %v564, %v562
    %v607 = vpack.c.b16 %v567, %v565
    %v608 = vpack.c.b16 %v568, %v566
    %v609 = vpack.c.b16 %v571, %v569
    %v610 = vpack.c.b16 %v572, %v570
    %v611 = vpack.c.b16 %v575, %v573
    %v612 = vpack.c.b16 %v576, %v574
    %v613 = vpack.c.b16 %v579, %v577
    %v614 = vpack.c.b16 %v580, %v578
    %v615 = vpack.c.b16 %v583, %v581
    %v616 = vpack.c.b16 %v584, %v582
    %649 = vmatprep.subr.bf16.mxu0 %v586
    %650 = vmatpush1.bf16.msra.mxu0 %v585
    %651 = vmatprep.subr.bf16.mxu0 %v588
    %652 = vmatpush1.bf16.msra.mxu0 %v587
    %653 = vmatprep.subr.bf16.mxu0 %v590
    %654 = vmatpush1.bf16.msra.mxu0 %v589
    %655 = vmatprep.subr.bf16.mxu0 %v592
    %656 = vmatpush1.bf16.msra.mxu0 %v591
    %657 = vmatprep.subr.bf16.mxu0 %v594
    %658 = vmatpush1.bf16.msra.mxu0 %v593
    %659 = vmatprep.subr.bf16.mxu0 %v596
    %660 = vmatpush1.bf16.msra.mxu0 %v595
    %661 = vmatprep.subr.bf16.mxu0 %v598
    %662 = vmatpush1.bf16.msra.mxu0 %v597
    %663 = vmatprep.subr.bf16.mxu0 %v600
    %664 = vmatpush1.bf16.msra.mxu0 %v599
    %665 = vmatprep.subr.bf16.mxu0 %v602
    %666 = vmatpush1.bf16.msra.mxu0 %v601
    %667 = vmatprep.subr.bf16.mxu0 %v604
    %668 = vmatpush1.bf16.msra.mxu0 %v603
    %669 = vmatprep.subr.bf16.mxu0 %v606
    %670 = vmatpush1.bf16.msra.mxu0 %v605
    %671 = vmatprep.subr.bf16.mxu0 %v608
    %672 = vmatpush1.bf16.msra.mxu0 %v607
    %673 = vmatprep.subr.bf16.mxu0 %v610
    %674 = vmatpush1.bf16.msra.mxu0 %v609
    %675 = vmatprep.subr.bf16.mxu0 %v612
    %676 = vmatpush1.bf16.msra.mxu0 %v611
    %677 = vmatprep.subr.bf16.mxu0 %v614
    %678 = vmatpush1.bf16.msra.mxu0 %v613
    %679 = vmatprep.subr.bf16.mxu0 %v616
    %680 = vmatpush1.bf16.msra.mxu0 %v615
    %681 = vmatprep.mubr.bf16.mxu0 %v442
    %682 = vmatmul.mubr.bf16.gmra.mrb[0].mxu0 %v441
    %v683 = vpop.f32.mrb[0].mxu0
    %v684 = vadd.f32 %v482, %v683
    %v685 = vpop.f32.mrb[0].mxu0
    %v686 = vadd.f32 %v486, %v685
    %v687 = vpop.f32.mrb[0].mxu0
    %v688 = vadd.f32 %v482, %v687
    %v689 = vpop.f32.mrb[0].mxu0
    %v690 = vadd.f32 %v486, %v689
    %691 = vmatprep.mubr.bf16.mxu0 %v444
    %692 = vmatmul.mubr.bf16.gmra.mrb[0].mxu0 %v443
    %v693 = vpop.f32.mrb[0].mxu0
    %v694 = vadd.f32 %v482, %v693
    %v695 = vpop.f32.mrb[0].mxu0
    %v696 = vadd.f32 %v486, %v695
    %v697 = vpop.f32.mrb[0].mxu0
    %v698 = vadd.f32 %v482, %v697
    %v699 = vpop.f32.mrb[0].mxu0
    %v700 = vadd.f32 %v486, %v699
    %701 = vdwg.mxu0
    %v702 = vmax.f32 %v684, 0.0
    %v703 = vmax.f32 %v686, 0.0
    %v704 = vmax.f32 %v688, 0.0
    %v705 = vmax.f32 %v690, 0.0
    %v706 = vmax.f32 %v694, 0.0
    %v707 = vmax.f32 %v696, 0.0
    %v708 = vmax.f32 %v698, 0.0
    %v709 = vmax.f32 %v700, 0.0
    %v710 = vpack.c.bf16 %v704, %v702
    %v711 = vpack.c.bf16 %v705, %v703
    %v712 = vpack.c.bf16 %v708, %v706
    %v713 = vpack.c.bf16 %v709, %v707
    %v714 = vld [vmem:[#allocation6] sm:$0xf]
    %v715 = vld [vmem:[#allocation6 + $0x4] sm:$0xf]
    %v716 = vld [vmem:[#allocation6 + $0x8] sm:$0xf]
    %v717 = vld [vmem:[#allocation6 + $0xc] sm:$0xf]
    %v718 = vld [vmem:[#allocation6 + $0x10] sm:$0xf]
    %v719 = vld [vmem:[#allocation6 + $0x14] sm:$0xf]
    %v720 = vld [vmem:[#allocation6 + $0x18] sm:$0xf]
    %v721 = vld [vmem:[#allocation6 + $0x1c] sm:$0xf]
    %v722 = vld [vmem:[#allocation6 + $0x20] sm:$0xf]
    %v723 = vld [vmem:[#allocation6 + $0x24] sm:$0xf]
    %v724 = vld [vmem:[#allocation6 + $0x28] sm:$0xf]
    %v725 = vld [vmem:[#allocation6 + $0x2c] sm:$0xf]
    %v726 = vld [vmem:[#allocation6 + $0x30] sm:$0xf]
    %v727 = vld [vmem:[#allocation6 + $0x34] sm:$0xf]
    %v728 = vld [vmem:[#allocation6 + $0x38] sm:$0xf]
    %v729 = vld [vmem:[#allocation6 + $0x3c] sm:$0xf]
    %v730 = vld [vmem:[#allocation6 + $0x40] sm:$0xf]
    %v731 = vld [vmem:[#allocation6 + $0x44] sm:$0xf]
    %v732 = vld [vmem:[#allocation6 + $0x48] sm:$0xf]
    %v733 = vld [vmem:[#allocation6 + $0x4c] sm:$0xf]
    %v734 = vld [vmem:[#allocation6 + $0x50] sm:$0xf]
    %v735 = vld [vmem:[#allocation6 + $0x54] sm:$0xf]
    %v736 = vld [vmem:[#allocation6 + $0x58] sm:$0xf]
    %v737 = vld [vmem:[#allocation6 + $0x5c] sm:$0xf]
    %v738 = vld [vmem:[#allocation6 + $0x60] sm:$0xf]
    %v739 = vld [vmem:[#allocation6 + $0x64] sm:$0xf]
    %v740 = vld [vmem:[#allocation6 + $0x68] sm:$0xf]
    %v741 = vld [vmem:[#allocation6 + $0x6c] sm:$0xf]
    %v742 = vld [vmem:[#allocation6 + $0x70] sm:$0xf]
    %v743 = vld [vmem:[#allocation6 + $0x74] sm:$0xf]
    %v744 = vld [vmem:[#allocation6 + $0x78] sm:$0xf]
    %v745 = vld [vmem:[#allocation6 + $0x7c] sm:$0xf]
    %v746 = vld [vmem:[%s8] sm:$0x1]
    %v748 = vlaneseq
    %v749 = vshrl.u32 %v748, 7
    %v750 = vsub.s32 0, %v749
    %v751 = vrot.slane %v746, %v750
    %v785 = vunpack.c.l.b16 %v714
    %v786 = vunpack.c.l.b16 %v715
    %v787 = vunpack.c.l.b16 %v716
    %v788 = vunpack.c.l.b16 %v717
    %v789 = vunpack.c.l.b16 %v718
    %v790 = vunpack.c.l.b16 %v719
    %v791 = vunpack.c.l.b16 %v720
    %v792 = vunpack.c.l.b16 %v721
    %v793 = vunpack.c.l.b16 %v722
    %v794 = vunpack.c.l.b16 %v723
    %v795 = vunpack.c.l.b16 %v724
    %v796 = vunpack.c.l.b16 %v725
    %v797 = vunpack.c.l.b16 %v726
    %v798 = vunpack.c.l.b16 %v727
    %v799 = vunpack.c.l.b16 %v728
    %v800 = vunpack.c.l.b16 %v729
    %v801 = vunpack.c.l.b16 %v730
    %v802 = vunpack.c.l.b16 %v731
    %v803 = vunpack.c.l.b16 %v732
    %v804 = vunpack.c.l.b16 %v733
    %v805 = vunpack.c.l.b16 %v734
    %v806 = vunpack.c.l.b16 %v735
    %v807 = vunpack.c.l.b16 %v736
    %v808 = vunpack.c.l.b16 %v737
    %v809 = vunpack.c.l.b16 %v738
    %v810 = vunpack.c.l.b16 %v739
    %v811 = vunpack.c.l.b16 %v740
    %v812 = vunpack.c.l.b16 %v741
    %v813 = vunpack.c.l.b16 %v742
    %v814 = vunpack.c.l.b16 %v743
    %v815 = vunpack.c.l.b16 %v744
    %v816 = vunpack.c.l.b16 %v745
    %v817 = vpack.c.b16 %v786, %v785
    %v818 = vpack.c.b16 %v788, %v787
    %v819 = vpack.c.b16 %v790, %v789
    %v820 = vpack.c.b16 %v792, %v791
    %v821 = vpack.c.b16 %v794, %v793
    %v822 = vpack.c.b16 %v796, %v795
    %v823 = vpack.c.b16 %v798, %v797
    %v824 = vpack.c.b16 %v800, %v799
    %v825 = vpack.c.b16 %v802, %v801
    %v826 = vpack.c.b16 %v804, %v803
    %v827 = vpack.c.b16 %v806, %v805
    %v828 = vpack.c.b16 %v808, %v807
    %v829 = vpack.c.b16 %v810, %v809
    %v830 = vpack.c.b16 %v812, %v811
    %v831 = vpack.c.b16 %v814, %v813
    %v832 = vpack.c.b16 %v816, %v815
    %849 = vmatprep.subr.bf16.mxu0 0
    %850 = vmatpush1.bf16.msra.mxu0 %v817
    %851 = vmatprep.subr.bf16.mxu0 0
    %852 = vmatpush1.bf16.msra.mxu0 %v818
    %853 = vmatprep.subr.bf16.mxu0 0
    %854 = vmatpush1.bf16.msra.mxu0 %v819
    %855 = vmatprep.subr.bf16.mxu0 0
    %856 = vmatpush1.bf16.msra.mxu0 %v820
    %857 = vmatprep.subr.bf16.mxu0 0
    %858 = vmatpush1.bf16.msra.mxu0 %v821
    %859 = vmatprep.subr.bf16.mxu0 0
    %860 = vmatpush1.bf16.msra.mxu0 %v822
    %861 = vmatprep.subr.bf16.mxu0 0
    %862 = vmatpush1.bf16.msra.mxu0 %v823
    %863 = vmatprep.subr.bf16.mxu0 0
    %864 = vmatpush1.bf16.msra.mxu0 %v824
    %865 = vmatprep.subr.bf16.mxu0 0
    %866 = vmatpush1.bf16.msra.mxu0 %v825
    %867 = vmatprep.subr.bf16.mxu0 0
    %868 = vmatpush1.bf16.msra.mxu0 %v826
    %869 = vmatprep.subr.bf16.mxu0 0
    %870 = vmatpush1.bf16.msra.mxu0 %v827
    %871 = vmatprep.subr.bf16.mxu0 0
    %872 = vmatpush1.bf16.msra.mxu0 %v828
    %873 = vmatprep.subr.bf16.mxu0 0
    %874 = vmatpush1.bf16.msra.mxu0 %v829
    %875 = vmatprep.subr.bf16.mxu0 0
    %876 = vmatpush1.bf16.msra.mxu0 %v830
    %877 = vmatprep.subr.bf16.mxu0 0
    %878 = vmatpush1.bf16.msra.mxu0 %v831
    %879 = vmatprep.subr.bf16.mxu0 0
    %880 = vmatpush1.bf16.msra.mxu0 %v832
    %881 = vmatprep.mubr.bf16.mxu0 %v711
    %882 = vmatmul.mubr.bf16.gmra.mrb[0].mxu0 %v710
    %v883 = vpop.f32.mrb[0].mxu0
    %v884 = vadd.f32 %v751, %v883
    %v885 = vpop.f32.mrb[0].mxu0
    %v886 = vpop.f32.mrb[0].mxu0
    %v887 = vadd.f32 %v751, %v886
    %v888 = vpop.f32.mrb[0].mxu0
    %889 = vmatprep.mubr.bf16.mxu0 %v713
    %890 = vmatmul.mubr.bf16.gmra.mrb[0].mxu0 %v712
    %v891 = vpop.f32.mrb[0].mxu0
    %v892 = vadd.f32 %v751, %v891
    %v893 = vpop.f32.mrb[0].mxu0
    %v894 = vpop.f32.mrb[0].mxu0
    %v895 = vadd.f32 %v751, %v894
    %v896 = vpop.f32.mrb[0].mxu0
    %897 = vdwg.mxu0
    %v898 = vtanh.pop %v884
    %v899 = vtanh.pop %v887
    %v900 = vtanh.pop %v892
    %v901 = vtanh.pop %v895
    %902 = vst [vmem:[%s9] sm:$0xff] %v898
    %903 = vst [vmem:[%s9 + $0x8] sm:$0xff] %v899
    %904 = vst [vmem:[%s9 + $0x10] sm:$0xff] %v900
    %905 = vst [vmem:[%s9 + $0x18] sm:$0xff] %v901
    // Predicated region
    $region50: #{actor_forward.1} parent=1 // pred_check
      _
    $region51: #{actor_forward.1} parent=1 // pred_check_branch
      %907 = sbr.rel (0) target = $region53
    $region52: #{actor_forward.1} parent=1 // pred_region
      _
    $region53: #{actor_forward.1} parent=1 // pred_fallthru
      _
    // Predicated region
    $region54: #{actor_forward.1} parent=1 // pred_check
      _
    $region55: #{actor_forward.1} parent=1 // pred_check_branch
      %909 = sbr.rel (0) target = $region57
    $region56: #{actor_forward.1} parent=1 // pred_region
      _
    $region57: #{actor_forward.1} parent=1 // pred_fallthru
      _
    %910 = vsyncpa [#allocation3], 1
    %911 = vsyncpa [#allocation5], 1

</llo_original>
